<compile_context>
chip_gen: v5e
topology: v5e:2x2
jax: 0.10.0
libtpu: 0.0.40
codegen_flags: <defaults>
</compile_context>

<pallas_src>
import jax
import jax.numpy as jnp
from jax.experimental import pallas as pl
from jax.experimental.pallas import tpu as pltpu


def _round_up(x, m):
    return ((x + m - 1) // m) * m


def _fold_params(params):
    """Fold the two RevIN affines + fc(2->1) into 7 scalars.

    params = [wt, bt, wf, bf, fc_w0, fc_w1, fc_b, eps].  With xn the
    per-instance normalized input:
      x_time = xn*wt + bt,  x_freq = xn*wf + bf
      sigmoid arg = x_time*w0 + x_freq*w1 + fb
                  = xn*(wt*w0 + wf*w1) + (bt*w0 + bf*w1 + fb)
      output      = x_freq + z*(x_time - x_freq)
                  = (xn*wf + bf) + z*(xn*(wt - wf) + (bt - bf))
    """
    p = params.astype(jnp.float32)
    wt, bt, wf, bf, w0, w1, fb, eps = (p[i] for i in range(8))
    return jnp.stack([
        wt * w0 + wf * w1,        # a_sig
        bt * w0 + bf * w1 + fb,   # b_sig
        wt - wf,                  # a_diff
        bt - bf,                  # b_diff
        wf,                       # freq weight
        bf,                       # freq bias
        eps,
    ])


def _adaptive_norm_kernel(scal_ref, x_ref, o_ref):
    # scal_ref: SMEM (7,) f32 folded scalars; x_ref / o_ref: one (tb, L) tile.
    a_sig, b_sig = scal_ref[0], scal_ref[1]
    a_diff, b_diff = scal_ref[2], scal_ref[3]
    wf, bf = scal_ref[4], scal_ref[5]
    eps = scal_ref[6]

    x = x_ref[...].astype(jnp.float32)        # single per-tile cast (bf16-safe)

    # RevIN 'norm': statistics over the sequence (lane) axis, biased variance.
    mean = jnp.mean(x, axis=-1, keepdims=True)
    xc = x - mean
    var = jnp.mean(xc * xc, axis=-1, keepdims=True)
    xn = xc * jax.lax.rsqrt(var + eps)

    # weights = sigmoid(Linear(2,1)([x_time, x_freq])), affines folded.
    z = jax.nn.sigmoid(xn * a_sig + b_sig)
    # weighted_combined = z*x_time + (1-z)*x_freq = x_freq + z*(x_time - x_freq)
    o_ref[...] = (xn * wf + bf + z * (xn * a_diff + b_diff)).astype(o_ref.dtype)


_TILE_BYTES = 2 * 1024 * 1024          # per-buffer f32 cap (~8 MiB w/ dbl-buf in+out)
_VMEM_LIMIT = 32 * 1024 * 1024         # safe on v5e / v6e / v7x


def adaptive_normalization(x_enc, params):
    """x_enc: (B, L, 1); params: (8,) = [wt, bt, wf, bf, fc_w0, fc_w1, fc_b, eps]."""
    B, L, C = x_enc.shape
    assert C == 1, "nn.Linear(2, 1) in the module implies n_vars == 1"
    x = x_enc.reshape(B, L)
    folded = _fold_params(params)
    dtype = x_enc.dtype

    # Rows per block: as many batch rows as fit the per-buffer byte budget,
    # multiple of 8 (sublane granularity).  L stays whole inside the block so
    # the mean/var reduction is never split across grid steps.
    bytes_per_row = max(L, 1) * 4
    max_rows = max(8, min(_TILE_BYTES // bytes_per_row, 2048))
    max_rows = (max_rows // 8) * 8
    tb = min(max_rows, _round_up(B, 8))

    n_blocks = pl.cdiv(B, tb)
    Bp = n_blocks * tb
    xp = jnp.pad(x, ((0, Bp - B), (0, 0))) if Bp != B else x
    # Zero-padded rows yield finite garbage (var=0 -> rsqrt(eps)); sliced off.

    out = pl.pallas_call(
        _adaptive_norm_kernel,
        out_shape=jax.ShapeDtypeStruct((Bp, L), dtype),
        grid=(n_blocks,),
        in_specs=[
            pl.BlockSpec(memory_space=pltpu.MemorySpace.SMEM),
            pl.BlockSpec((tb, L), lambda i: (i, 0)),
        ],
        out_specs=pl.BlockSpec((tb, L), lambda i: (i, 0)),
        compiler_params=pltpu.CompilerParams(
            dimension_semantics=("parallel",),
            vmem_limit_bytes=_VMEM_LIMIT,
        ),
    )(folded, xp)

    out = out[:B] if Bp != B else out
    return out.reshape(B, L, 1)


def adaptive_normalization_ref(x_enc, params):
    """Pure-JAX reference mirroring the PyTorch forward (unfolded math)."""
    wt, bt, wf, bf, w0, w1, fb, eps = [params[i] for i in range(8)]
    mean = jnp.mean(x_enc, axis=1, keepdims=True)
    var = jnp.mean((x_enc - mean) ** 2, axis=1, keepdims=True)
    xn = (x_enc - mean) / jnp.sqrt(var + eps)
    x_time = xn * wt + bt
    x_freq = xn * wf + bf
    combined = jnp.concatenate([x_time, x_freq], axis=-1)       # (B, L, 2)
    flat = combined.reshape(-1, 2)
    weights = jax.nn.sigmoid(flat @ jnp.array([[w0], [w1]]) + fb)
    weights = weights.reshape(x_enc.shape[0], x_enc.shape[1], -1)
    return weights * x_time + (1.0 - weights) * x_freq


if __name__ == "__main__":
    key0, key1 = jax.random.split(jax.random.PRNGKey(0))

    # Deterministic parameter init (synthetic weights, not a checkpoint load):
    # [revin_w, revin_b, revin_freq_w, revin_freq_b, fc_w0, fc_w1, fc_b, eps]
    params = jnp.array([1.10, 0.05, 0.90, -0.03, 0.35, -0.20, 0.10, 1e-5],
                       dtype=jnp.float32)

    # Short sequence (L < 128): lane-sparse reduce, still a single HBM pass.
    B1, L1 = 2, 16
    x1 = jax.random.normal(key0, (B1, L1, 1), dtype=jnp.float32)
    out1 = jax.block_until_ready(adaptive_normalization(x1, params))
    ref1 = adaptive_normalization_ref(x1, params)
    assert out1.shape == (B1, L1, 1)
    assert jnp.allclose(out1, ref1, atol=1e-5, rtol=1e-5)

    # Longer sequence (L >= 128): sequence lane-dense, reduce over lanes.
    B2, L2 = 4, 256
    x2 = jax.random.normal(key1, (B2, L2, 1), dtype=jnp.float32)
    out2 = jax.block_until_ready(adaptive_normalization(x2, params))
    ref2 = adaptive_normalization_ref(x2, params)
    assert out2.shape == (B2, L2, 1)
    assert jnp.allclose(out2, ref2, atol=1e-5, rtol=1e-5)

    # TODO(synk): `revin` / `revin_freq` are constructor-injected in PyTorch;
    # they are modeled here as two standard RevIN instances with their own
    # scalar affine params (n_vars == 1).
    print("KERNEL_OK")
</pallas_src>

<mosaic_0001>
module attributes {stable_mosaic.version = 11 : i64} {
  func.func @_adaptive_norm_kernel(%arg0: i32, %arg1: memref<7xf32, #tpu.memory_space<smem>>, %arg2: memref<8x16xf32, #tpu.memory_space<vmem>>, %arg3: memref<8x16xf32, #tpu.memory_space<vmem>>) attributes {dimension_semantics = [#tpu.dimension_semantics<parallel>], iteration_bounds = array<i64: 1>, scalar_prefetch = 0 : i64, scratch_operands = 0 : i64, tpu.core_type = #tpu.core_type<tc>, window_params = [{transform_indices = @transform_0, window_bounds = array<i64: 7>}, {transform_indices = @transform_1, window_bounds = array<i64: 8, 16>}, {transform_indices = @transform_2, window_bounds = array<i64: 8, 16>}]} {
    %c0 = arith.constant 0 : index
    %0 = memref.load %arg1[%c0] : memref<7xf32, #tpu.memory_space<smem>>
    %c1 = arith.constant 1 : index
    %1 = memref.load %arg1[%c1] : memref<7xf32, #tpu.memory_space<smem>>
    %c2 = arith.constant 2 : index
    %2 = memref.load %arg1[%c2] : memref<7xf32, #tpu.memory_space<smem>>
    %c3 = arith.constant 3 : index
    %3 = memref.load %arg1[%c3] : memref<7xf32, #tpu.memory_space<smem>>
    %c4 = arith.constant 4 : index
    %4 = memref.load %arg1[%c4] : memref<7xf32, #tpu.memory_space<smem>>
    %c5 = arith.constant 5 : index
    %5 = memref.load %arg1[%c5] : memref<7xf32, #tpu.memory_space<smem>>
    %c6 = arith.constant 6 : index
    %6 = memref.load %arg1[%c6] : memref<7xf32, #tpu.memory_space<smem>>
    %c0_0 = arith.constant 0 : index
    %c0_1 = arith.constant 0 : index
    %7 = vector.load %arg2[%c0_0, %c0_1] : memref<8x16xf32, #tpu.memory_space<vmem>>, vector<8x16xf32>
    %cst = arith.constant dense<0.000000e+00> : vector<8xf32>
    %8 = vector.multi_reduction <add>, %7, %cst [1] : vector<8x16xf32> to vector<8xf32>
    %9 = vector.shape_cast %8 : vector<8xf32> to vector<8x1xf32>
    %cst_2 = arith.constant 1.600000e+01 : f32
    %10 = vector.broadcast %cst_2 : f32 to vector<8x1xf32>
    %11 = arith.divf %9, %10 : vector<8x1xf32>
    %12 = vector.broadcast %11 : vector<8x1xf32> to vector<8x16xf32>
    %13 = arith.subf %7, %12 : vector<8x16xf32>
    %14 = arith.mulf %13, %13 : vector<8x16xf32>
    %cst_3 = arith.constant dense<0.000000e+00> : vector<8xf32>
    %15 = vector.multi_reduction <add>, %14, %cst_3 [1] : vector<8x16xf32> to vector<8xf32>
    %16 = vector.shape_cast %15 : vector<8xf32> to vector<8x1xf32>
    %cst_4 = arith.constant 1.600000e+01 : f32
    %17 = vector.broadcast %cst_4 : f32 to vector<8x1xf32>
    %18 = arith.divf %16, %17 : vector<8x1xf32>
    %19 = vector.broadcast %6 : f32 to vector<8x1xf32>
    %20 = arith.addf %18, %19 : vector<8x1xf32>
    %21 = math.rsqrt %20 : vector<8x1xf32>
    %22 = vector.broadcast %21 : vector<8x1xf32> to vector<8x16xf32>
    %23 = arith.mulf %13, %22 : vector<8x16xf32>
    %24 = vector.broadcast %0 : f32 to vector<8x16xf32>
    %25 = arith.mulf %23, %24 : vector<8x16xf32>
    %26 = vector.broadcast %1 : f32 to vector<8x16xf32>
    %27 = arith.addf %25, %26 : vector<8x16xf32>
    %28 = arith.negf %27 : vector<8x16xf32>
    %29 = math.exp %28 : vector<8x16xf32>
    %cst_5 = arith.constant 1.000000e+00 : f32
    %30 = vector.broadcast %cst_5 : f32 to vector<8x16xf32>
    %31 = arith.addf %30, %29 : vector<8x16xf32>
    %32 = arith.divf %30, %31 : vector<8x16xf32>
    %33 = vector.broadcast %4 : f32 to vector<8x16xf32>
    %34 = arith.mulf %23, %33 : vector<8x16xf32>
    %35 = vector.broadcast %5 : f32 to vector<8x16xf32>
    %36 = arith.addf %34, %35 : vector<8x16xf32>
    %37 = vector.broadcast %2 : f32 to vector<8x16xf32>
    %38 = arith.mulf %23, %37 : vector<8x16xf32>
    %39 = vector.broadcast %3 : f32 to vector<8x16xf32>
    %40 = arith.addf %38, %39 : vector<8x16xf32>
    %41 = arith.mulf %32, %40 : vector<8x16xf32>
    %42 = arith.addf %36, %41 : vector<8x16xf32>
    %c0_6 = arith.constant 0 : index
    %c0_7 = arith.constant 0 : index
    %43 = vector.load %arg3[%c0_6, %c0_7] : memref<8x16xf32, #tpu.memory_space<vmem>>, vector<8x16xf32>
    tpu.vector_store %arg3[%c0_6, %c0_7], %42 {strides = array<i32>} : memref<8x16xf32, #tpu.memory_space<vmem>>, vector<8x16xf32>,
    return
  }
  func.func @transform_0(%arg0: i32) -> i32 {
    %c0_i32 = arith.constant 0 : i32
    %c0_i32_0 = arith.constant 0 : i32
    return %c0_i32 : i32
  }
  func.func @transform_1(%arg0: i32) -> (i32, i32) {
    %c0_i32 = arith.constant 0 : i32
    %c0_i32_0 = arith.constant 0 : i32
    return %arg0, %c0_i32 : i32, i32
  }
  func.func @transform_2(%arg0: i32) -> (i32, i32) {
    %c0_i32 = arith.constant 0 : i32
    %c0_i32_0 = arith.constant 0 : i32
    return %arg0, %c0_i32 : i32, i32
  }
}

</mosaic_0001>

<llo_original>
// kernel: tpu_custom_call.1
$region0: #{tpu_custom_call.1}
  #allocation0 [shape = 'u32[]', space=smem, size = 0x4, offset = 0x4, fixed_abs, tag = 'smem constant byte address 0x4 - core index']
  #allocation1 [shape = 'u32[72,128]{1,0:T(1,128)}', space=vmem, size = 0x9000, scoped, tag = 'internal scratch']
  %s0 = inlined_call_operand.hbm [shape: f32[7], index: 0, kind: input, shape index: {}]
  %s1 = inlined_call_operand.hbm [shape: f32[8,16], index: 1, kind: input, shape index: {}]
  %s2 = inlined_call_operand.hbm [shape: f32[8,16], index: 2, kind: output, shape index: {}]
  %s3 = sld [smem:[#allocation0]]
  $region26: #{tpu_custom_call.1} parent=0
    _
  %s5 = ssub.s32 1, %s3
  %s6 = scalar_select 0, %s5, %s3
  $region1: #{tpu_custom_call.1} parent=0
    #allocation2 [shape = 'u8[512]{0}', space=smem, size = 0x200, scoped, tag = 'input window, operand 0, single buffered']
    #allocation3 [shape = 's32[1]{0}', space=sflag, size = 0x4, scoped, tag = 'scoped memory for tpu_custom_call.1']
    #allocation4 [shape = 's32[1]{0}', space=sflag, size = 0x4, scoped, tag = 'scoped memory for tpu_custom_call.1']
    #allocation5 [shape = 's32[1]{0}', space=sflag, size = 0x4, scoped, tag = 'scoped memory for tpu_custom_call.1']
    #allocation6 [shape = 'u8[4096]{0}', space=vmem, size = 0x1000, scoped, tag = 'input window, operand 1, single buffered']
    #allocation7 [shape = 'u8[4096]{0}', space=vmem, size = 0x1000, scoped, tag = 'output window, operand 0, single buffered']
    %7 = vsyncpa [#allocation5], 0
    %8 = vsyncpa [#allocation3], 0
    %9 = vsyncpa [#allocation4], 0
    // Predicated region
    $region2: #{tpu_custom_call.1} parent=1 // pred_check
      _
    $region3: #{tpu_custom_call.1} parent=1 // pred_check_branch
      %11 = sbr.rel (0) target = $region5
    $region4: #{tpu_custom_call.1} parent=1 // pred_region
      %13 = vsyncadd [#allocation5], 0
      %s15 = sshll.u32 %s0, 4
      %s16 = int_to_ptr.hbm [resolvable:$true] %s15
      %18 = dma.hbm_to_smem %s16, 16, [#allocation2], [#allocation5]
    $region5: #{tpu_custom_call.1} parent=1 // pred_fallthru
      _
    // Predicated region
    $region6: #{tpu_custom_call.1} parent=1 // pred_check
      _
    $region7: #{tpu_custom_call.1} parent=1 // pred_check_branch
      %20 = sbr.rel (0) target = $region9
    $region8: #{tpu_custom_call.1} parent=1 // pred_region
      %22 = vsyncadd [#allocation3], 0
      %s24 = sshll.u32 %s1, 4
      %s25 = int_to_ptr.hbm [resolvable:$true] %s24
      %s26 = sshll.u32 [#allocation6], 4
      %s27 = int_to_ptr.vmem [resolvable:$true] %s26
      %29 = dma.hbm_to_vmem [thread:$0]  %s25, 128, %s27, [#allocation3]
    $region9: #{tpu_custom_call.1} parent=1 // pred_fallthru
      _
    // Predicated region
    $region10: #{tpu_custom_call.1} parent=1 // pred_check
      _
    $region11: #{tpu_custom_call.1} parent=1 // pred_check_branch
      %31 = sbr.rel (0) target = $region13
    $region12: #{tpu_custom_call.1} parent=1 // pred_region
      %33 = dma.done [#allocation5], 16
    $region13: #{tpu_custom_call.1} parent=1 // pred_fallthru
      _
    // Predicated region
    $region14: #{tpu_custom_call.1} parent=1 // pred_check
      _
    $region15: #{tpu_custom_call.1} parent=1 // pred_check_branch
      %35 = sbr.rel (0) target = $region17
    $region16: #{tpu_custom_call.1} parent=1 // pred_region
      %37 = dma.done [#allocation3], 128
    $region17: #{tpu_custom_call.1} parent=1 // pred_fallthru
      _
    %38 = sfence
    %s39 = sld [smem:[#allocation2]]
    %s40 = sld [smem:[#allocation2 + $0x1]]
    %s41 = sld [smem:[#allocation2 + $0x2]]
    %s42 = sld [smem:[#allocation2 + $0x3]]
    %s43 = sld [smem:[#allocation2 + $0x4]]
    %s44 = sld [smem:[#allocation2 + $0x5]]
    %s45 = sld [smem:[#allocation2 + $0x6]]
    %v46 = vld [vmem:[#allocation6] sm:$0xff]
    %vm47 = vcmask 130048
    %v48 = vsel %vm47, %v46, 0.0
    %49 = vadd.xlane.f32.xlu0 %v48
    %v50 = vpop.xlane.xlu0 %49
    %v51 = vrcp.pop 16.0
    %v52 = vmul.f32 16.0, %v51
    %v53 = vsub.f32 1.0, %v52
    %v54 = vmul.f32 %v51, %v53
    %v55 = vadd.f32 %v51, %v54
    %vm56 = vweird.f32 %v51
    %v57 = vsel %vm56, %v51, %v55
    %v58 = vmul.f32 %v50, %v57
    %v59 = vsub.f32 %v46, %v58
    %v60 = vmul.f32 %v59, %v59
    %v61 = vsel %vm47, %v60, 0.0
    %62 = vadd.xlane.f32.xlu0 %v61
    %v63 = vpop.xlane.xlu0 %62
    %v64 = vmul.f32 %v63, %v57
    %v65 = vstv %s45
    %v66 = vadd.f32 %v64, %v65
    %v67 = vrsqrt.pop %v66
    %v68 = vmul.f32 %v67, %v66
    %v69 = vmul.f32 %v68, %v67
    %v70 = vmul.f32 0.5, %v69
    %v71 = vsub.f32 1.5, %v70
    %v72 = vmul.f32 %v67, %v71
    %vm73 = vweird.f32 %v66
    %vm74 = vweird.f32 %v67
    %vm75 = vmor %vm73, %vm74
    %v76 = vsel %vm75, %v67, %v72
    %v77 = vmul.f32 %v59, %v76
    %v78 = vstv %s39
    %v79 = vmul.f32 %v77, %v78
    %v80 = vstv %s40
    %v81 = vadd.f32 %v79, %v80
    %v82 = vxor.u32 %v81, 2147483648
    %v83 = vmul.f32 %v82, 1.442695
    %v84 = vpow.pop %v83
    %v85 = vadd.f32 %v84, 1.0
    %v86 = vrcp.pop %v85
    %v87 = vmul.f32 %v85, %v86
    %v88 = vsub.f32 1.0, %v87
    %v89 = vmul.f32 %v86, %v88
    %v90 = vadd.f32 %v86, %v89
    %vm91 = vweird.f32 %v85
    %vm92 = vweird.f32 %v86
    %vm93 = vmor %vm91, %vm92
    %v94 = vsel %vm93, %v86, %v90
    %v95 = vand.u32 2147483647, %v85
    %vm96 = vcmp.eq.f32.partialorder %v95, 8.507059e+37
    %v97 = vand.u32 %v85, 2147483648
    %v98 = vor.u32 1.1754944e-38, %v97
    %v99 = vsel %vm96, %v98, %v94
    %v100 = vmul.f32 1.0, %v99
    %v101 = vstv %s43
    %v102 = vmul.f32 %v77, %v101
    %v103 = vstv %s44
    %v104 = vadd.f32 %v102, %v103
    %v105 = vstv %s41
    %v106 = vmul.f32 %v77, %v105
    %v107 = vstv %s42
    %v108 = vadd.f32 %v106, %v107
    %v109 = vmul.f32 %v100, %v108
    %v110 = vadd.f32 %v104, %v109
    %111 = vst.msk [vmem:[#allocation7] sm:$0xff] %vm47, %v110
    // Predicated region
    $region18: #{tpu_custom_call.1} parent=1 // pred_check
      _
    $region19: #{tpu_custom_call.1} parent=1 // pred_check_branch
      %113 = sbr.rel (0) target = $region21
    $region20: #{tpu_custom_call.1} parent=1 // pred_region
      %115 = vsyncadd [#allocation4], 0
      %s117 = sshll.u32 [#allocation7], 4
      %s118 = int_to_ptr.vmem [resolvable:$true] %s117
      %s119 = sshll.u32 %s2, 4
      %s120 = int_to_ptr.hbm [resolvable:$true] %s119
      %122 = dma.vmem_to_hbm [thread:$0]  %s118, 128, %s120, [#allocation4]
    $region21: #{tpu_custom_call.1} parent=1 // pred_fallthru
      _
    // Predicated region
    $region22: #{tpu_custom_call.1} parent=1 // pred_check
      _
    $region23: #{tpu_custom_call.1} parent=1 // pred_check_branch
      %124 = sbr.rel (0) target = $region25
    $region24: #{tpu_custom_call.1} parent=1 // pred_region
      %126 = dma.done [#allocation4], 128
    $region25: #{tpu_custom_call.1} parent=1 // pred_fallthru
      _
    %127 = vsyncpa [#allocation3], 1
    %128 = vsyncpa [#allocation4], 1
    %129 = vsyncpa [#allocation5], 1

</llo_original>
